<compile_context>
chip_gen: v5e
topology: v5e:2x2
jax: 0.10.0
libtpu: 0.0.40
codegen_flags: <defaults>
</compile_context>

<pallas_src>
import functools

import jax
import jax.numpy as jnp
from jax import lax
from jax.experimental import pallas as pl
from jax.experimental.pallas import tpu as pltpu


def _gelu_exact(x):
    # PyTorch nn.GELU default (erf-based, not the tanh approximation).
    inv_sqrt2 = jnp.float32(0.7071067811865476)
    return 0.5 * x * (1.0 + lax.erf(x * inv_sqrt2))


def mencoder_kernel(x_ref, gamma_ref, beta_ref, w1_ref, b1_ref, w2_ref, b2_ref,
                    o_ref, x_acc, *, eps):
    l = pl.program_id(1)

    # Initialize the f32 carry from the input rows at the first layer step.
    @pl.when(l == 0)
    def _init():
        x_acc[...] = x_ref[...].astype(jnp.float32)

    x = x_acc[...]                                 # (TR, D) f32 carry
    gamma = gamma_ref[...].astype(jnp.float32)     # (1, D)
    beta = beta_ref[...].astype(jnp.float32)       # (1, D)

    # --- shared LayerNorm over the channel dim (f32 on the VPU) ---
    mu = jnp.mean(x, axis=-1, keepdims=True)
    xc = x - mu
    var = jnp.mean(xc * xc, axis=-1, keepdims=True)
    xn = xc * lax.rsqrt(var + jnp.float32(eps))
    xn = xn * gamma + beta

    # --- Mlp: fc1 -> GELU -> fc2; bf16 MXU inputs, f32 accumulation ---
    h = jnp.dot(xn.astype(jnp.bfloat16), w1_ref[0],
                preferred_element_type=jnp.float32)          # (TR, H) f32
    h = h + b1_ref[0]                                        # (1, H) f32 broadcast
    h = _gelu_exact(h)
    y = jnp.dot(h.astype(jnp.bfloat16), w2_ref[0],
                preferred_element_type=jnp.float32)          # (TR, D) f32
    y = y + b2_ref[0]                                        # (1, D) f32 broadcast

    # --- residual ---
    # TODO(synk): Dropout omitted (identity in eval / inference mode).
    x_acc[...] = x + y

    # Write the output tile once, after the last layer.
    @pl.when(l == pl.num_programs(1) - 1)
    def _finalize():
        o_ref[...] = x_acc[...].astype(o_ref.dtype)


def _pick_row_tile(R):
    for cand in (1024, 512, 256, 128, 64, 32, 16, 8):
        if R % cand == 0:
            return cand
    return R


def mencoder_forward(x, params, *, eps=1e-5, row_tile=None):
    B, N, D = x.shape
    R = B * N
    x2 = x.reshape(R, D)

    # Weights streamed per layer in bf16 (halves DMA bytes, feeds the MXU natively);
    # biases / norm params stay f32 so all elementwise math is f32 (v5e-safe).
    w1 = params["w1"].astype(jnp.bfloat16)
    w2 = params["w2"].astype(jnp.bfloat16)
    b1 = params["b1"].astype(jnp.float32)
    b2 = params["b2"].astype(jnp.float32)
    gamma = params["gamma"].astype(jnp.float32)
    beta = params["beta"].astype(jnp.float32)
    L, _, H = w1.shape

    TR = _pick_row_tile(R) if row_tile is None else row_tile
    assert R % TR == 0
    grid = (R // TR, L)

    # Explicit VMEM budget: in/out tiles (x2 buffers), one layer of streamed
    # weights (x2 buffers), f32 carry scratch, plus headroom for f32 intermediates.
    itemsize_x = x.dtype.itemsize
    layer_w_bytes = 2 * D * H * 2            # w1 + w2 per layer, bf16
    layer_b_bytes = (H + D) * 4              # b1 + b2 per layer, f32
    est = (2 * 2 * TR * D * itemsize_x
           + 2 * 2 * (layer_w_bytes + layer_b_bytes)
           + TR * D * 4
           + 6 * TR * max(D, H) * 4
           + (2 << 20))
    vmem_limit = int(min(max(est, 16 << 20), 56 << 20))   # stay under v7x's 64 MiB

    cost = pl.CostEstimate(
        flops=int(4 * R * L * D * H),                       # two matmuls per layer
        transcendentals=int(R * L * H),                     # erf in GELU
        bytes_accessed=int(2 * R * D * itemsize_x
                           + (R // TR) * L * (layer_w_bytes + layer_b_bytes)),
    )

    kernel = functools.partial(mencoder_kernel, eps=eps)

    out = pl.pallas_call(
        kernel,
        out_shape=jax.ShapeDtypeStruct((R, D), x.dtype),
        grid_spec=pltpu.PrefetchScalarGridSpec(
            num_scalar_prefetch=0,
            grid=grid,
            in_specs=[
                pl.BlockSpec((TR, D), lambda i, l: (i, 0)),        # x rows (const over l)
                pl.BlockSpec((1, D), lambda i, l: (0, 0)),         # LayerNorm gamma
                pl.BlockSpec((1, D), lambda i, l: (0, 0)),         # LayerNorm beta
                pl.BlockSpec((1, D, H), lambda i, l: (l, 0, 0)),   # fc1 weight, layer l
                pl.BlockSpec((1, 1, H), lambda i, l: (l, 0, 0)),   # fc1 bias, layer l
                pl.BlockSpec((1, H, D), lambda i, l: (l, 0, 0)),   # fc2 weight, layer l
                pl.BlockSpec((1, 1, D), lambda i, l: (l, 0, 0)),   # fc2 bias, layer l
            ],
            out_specs=pl.BlockSpec((TR, D), lambda i, l: (i, 0)),
            scratch_shapes=[pltpu.VMEM((TR, D), jnp.float32)],     # f32 residual carry
        ),
        compiler_params=pltpu.CompilerParams(
            dimension_semantics=("parallel", "arbitrary"),
            vmem_limit_bytes=vmem_limit,
        ),
        cost_estimate=cost,
    )(x2, gamma, beta, w1, b1, w2, b2)
    return out.reshape(B, N, D)


def make_params(key, dim, hidden, layer_num, dtype=jnp.float32):
    ks = jax.random.split(key, 4)
    scale1 = 1.0 / jnp.sqrt(dim)
    scale2 = 1.0 / jnp.sqrt(hidden)
    # weights stored as (in, out) so the kernel does x @ W (matches y = x W^T + b
    # of nn.Linear with W_linear = W.T).
    w1 = jax.random.normal(ks[0], (layer_num, dim, hidden), dtype) * scale1
    b1 = jax.random.normal(ks[1], (layer_num, 1, hidden), dtype) * 0.02
    w2 = jax.random.normal(ks[2], (layer_num, hidden, dim), dtype) * scale2
    b2 = jax.random.normal(ks[3], (layer_num, 1, dim), dtype) * 0.02
    gamma = jnp.ones((1, dim), dtype)
    beta = jnp.zeros((1, dim), dtype)
    return {"w1": w1, "b1": b1, "w2": w2, "b2": b2, "gamma": gamma, "beta": beta}


def mencoder_reference(x, params, eps=1e-5, matmul_dtype=None):
    """Pure-JAX reference mirroring the PyTorch forward (eval mode).

    matmul_dtype=jnp.bfloat16 mimics the kernel's bf16-input / f32-accumulate matmuls.
    """
    L = params["w1"].shape[0]
    gamma = params["gamma"][0]
    beta = params["beta"][0]

    def mm(a, w):
        if matmul_dtype is not None:
            a = a.astype(matmul_dtype)
            w = w.astype(matmul_dtype)
        return jnp.dot(a, w, preferred_element_type=jnp.float32)

    for l in range(L):
        mu = jnp.mean(x, axis=-1, keepdims=True)
        var = jnp.mean((x - mu) ** 2, axis=-1, keepdims=True)
        xn = (x - mu) / jnp.sqrt(var + eps) * gamma + beta
        h = mm(xn, params["w1"][l]) + params["b1"][l][0]
        h = 0.5 * h * (1.0 + lax.erf(h * 0.7071067811865476))
        y = mm(h, params["w2"][l]) + params["b2"][l][0]
        x = x + y
    return x


if __name__ == "__main__":
    B, N, D = 2, 8, 32
    mlp_ratio = 4.0
    layer_num = 2
    H = int(D * mlp_ratio)

    key = jax.random.PRNGKey(0)
    kx, kp = jax.random.split(key)
    x = jax.random.normal(kx, (B, N, D), jnp.float32)
    params = make_params(kp, D, H, layer_num)

    out = mencoder_forward(x, params)
    out = jax.block_until_ready(out)
    assert out.shape == (B, N, D)

    # Tight check against a reference using the same bf16-input / f32-accumulate matmuls.
    ref_bf16 = mencoder_reference(x, params, matmul_dtype=jnp.bfloat16)
    assert jnp.allclose(out, ref_bf16, atol=1e-2, rtol=1e-2), "mismatch vs bf16-matmul reference"

    # Loose sanity check against the full-f32 reference (bf16 matmul rounding only).
    ref_f32 = mencoder_reference(x, params)
    assert jnp.allclose(out, ref_f32, atol=1e-1, rtol=1e-1), "mismatch vs f32 reference"

    print("KERNEL_OK")
</pallas_src>

<mosaic_0001>
module attributes {stable_mosaic.version = 11 : i64} {
  func.func @mencoder_kernel(%arg0: i32, %arg1: i32, %arg2: memref<16x32xf32, #tpu.memory_space<vmem>>, %arg3: memref<1x32xf32, #tpu.memory_space<vmem>>, %arg4: memref<1x32xf32, #tpu.memory_space<vmem>>, %arg5: memref<1x32x128xbf16, #tpu.memory_space<vmem>>, %arg6: memref<1x1x128xf32, #tpu.memory_space<vmem>>, %arg7: memref<1x128x32xbf16, #tpu.memory_space<vmem>>, %arg8: memref<1x1x32xf32, #tpu.memory_space<vmem>>, %arg9: memref<16x32xf32, #tpu.memory_space<vmem>>, %arg10: memref<16x32xf32, #tpu.memory_space<vmem>>) attributes {dimension_semantics = [#tpu.dimension_semantics<parallel>, #tpu.dimension_semantics<arbitrary>], iteration_bounds = array<i64: 1, 2>, scalar_prefetch = 0 : i64, scratch_operands = 1 : i64, tpu.core_type = #tpu.core_type<tc>, window_params = [{transform_indices = @transform_0, window_bounds = array<i64: 16, 32>}, {pipeline_mode = #tpu.pipeline_mode<synchronous>, transform_indices = @transform_1, window_bounds = array<i64: 1, 32>}, {pipeline_mode = #tpu.pipeline_mode<synchronous>, transform_indices = @transform_2, window_bounds = array<i64: 1, 32>}, {transform_indices = @transform_3, window_bounds = array<i64: 1, 32, 128>}, {transform_indices = @transform_4, window_bounds = array<i64: 1, 1, 128>}, {transform_indices = @transform_5, window_bounds = array<i64: 1, 128, 32>}, {transform_indices = @transform_6, window_bounds = array<i64: 1, 1, 32>}, {transform_indices = @transform_7, window_bounds = array<i64: 16, 32>}]} {
    %c0_i32 = arith.constant 0 : i32
    %0 = arith.cmpi eq, %arg1, %c0_i32 : i32
    %1 = arith.extui %0 : i1 to i32
    %c0_i32_0 = arith.constant 0 : i32
    %2 = arith.cmpi ne, %1, %c0_i32_0 : i32
    scf.if %2 {
      %c0_30 = arith.constant 0 : index
      %c0_31 = arith.constant 0 : index
      %55 = vector.load %arg2[%c0_30, %c0_31] : memref<16x32xf32, #tpu.memory_space<vmem>>, vector<16x32xf32>
      %c0_32 = arith.constant 0 : index
      %c0_33 = arith.constant 0 : index
      %56 = vector.load %arg10[%c0_32, %c0_33] : memref<16x32xf32, #tpu.memory_space<vmem>>, vector<16x32xf32>
      tpu.vector_store %arg10[%c0_32, %c0_33], %55 {strides = array<i32>} : memref<16x32xf32, #tpu.memory_space<vmem>>, vector<16x32xf32>,
    } else {
    }
    %c0 = arith.constant 0 : index
    %c0_1 = arith.constant 0 : index
    %3 = vector.load %arg10[%c0, %c0_1] : memref<16x32xf32, #tpu.memory_space<vmem>>, vector<16x32xf32>
    %c0_2 = arith.constant 0 : index
    %c0_3 = arith.constant 0 : index
    %4 = vector.load %arg3[%c0_2, %c0_3] : memref<1x32xf32, #tpu.memory_space<vmem>>, vector<1x32xf32>
    %c0_4 = arith.constant 0 : index
    %c0_5 = arith.constant 0 : index
    %5 = vector.load %arg4[%c0_4, %c0_5] : memref<1x32xf32, #tpu.memory_space<vmem>>, vector<1x32xf32>
    %cst = arith.constant dense<0.000000e+00> : vector<16xf32>
    %6 = vector.multi_reduction <add>, %3, %cst [1] : vector<16x32xf32> to vector<16xf32>
    %7 = vector.shape_cast %6 : vector<16xf32> to vector<16x1xf32>
    %cst_6 = arith.constant 3.200000e+01 : f32
    %8 = vector.broadcast %cst_6 : f32 to vector<16x1xf32>
    %9 = arith.divf %7, %8 : vector<16x1xf32>
    %10 = vector.broadcast %9 : vector<16x1xf32> to vector<16x32xf32>
    %11 = arith.subf %3, %10 : vector<16x32xf32>
    %12 = arith.mulf %11, %11 : vector<16x32xf32>
    %cst_7 = arith.constant dense<0.000000e+00> : vector<16xf32>
    %13 = vector.multi_reduction <add>, %12, %cst_7 [1] : vector<16x32xf32> to vector<16xf32>
    %14 = vector.shape_cast %13 : vector<16xf32> to vector<16x1xf32>
    %cst_8 = arith.constant 3.200000e+01 : f32
    %15 = vector.broadcast %cst_8 : f32 to vector<16x1xf32>
    %16 = arith.divf %14, %15 : vector<16x1xf32>
    %cst_9 = arith.constant 9.99999974E-6 : f32
    %17 = vector.broadcast %cst_9 : f32 to vector<16x1xf32>
    %18 = arith.addf %16, %17 : vector<16x1xf32>
    %19 = math.rsqrt %18 : vector<16x1xf32>
    %20 = vector.broadcast %19 : vector<16x1xf32> to vector<16x32xf32>
    %21 = arith.mulf %11, %20 : vector<16x32xf32>
    %22 = vector.broadcast %4 : vector<1x32xf32> to vector<16x32xf32>
    %23 = arith.mulf %21, %22 : vector<16x32xf32>
    %24 = vector.broadcast %5 : vector<1x32xf32> to vector<16x32xf32>
    %25 = arith.addf %23, %24 : vector<16x32xf32>
    %26 = arith.truncf %25 : vector<16x32xf32> to vector<16x32xbf16>
    %c0_10 = arith.constant 0 : index
    %c0_11 = arith.constant 0 : index
    %c0_12 = arith.constant 0 : index
    %27 = vector.load %arg5[%c0_10, %c0_11, %c0_12] : memref<1x32x128xbf16, #tpu.memory_space<vmem>>, vector<1x32x128xbf16>
    %28 = vector.shape_cast %27 : vector<1x32x128xbf16> to vector<32x128xbf16>
    %cst_13 = arith.constant dense<0.000000e+00> : vector<16x128xf32>
    %29 = tpu.matmul %26, %28, %cst_13 {dimension_numbers = #tpu.dot_dimension_numbers<[1], [0], [0], [1], [0, 0, 1, 1], [], []>} : vector<16x32xbf16>, vector<32x128xbf16>, vector<16x128xf32> -> vector<16x128xf32>
    %c0_14 = arith.constant 0 : index
    %c0_15 = arith.constant 0 : index
    %c0_16 = arith.constant 0 : index
    %30 = vector.load %arg6[%c0_14, %c0_15, %c0_16] : memref<1x1x128xf32, #tpu.memory_space<vmem>>, vector<1x1x128xf32>
    %31 = vector.shape_cast %30 : vector<1x1x128xf32> to vector<1x128xf32>
    %32 = vector.broadcast %31 : vector<1x128xf32> to vector<16x128xf32>
    %33 = arith.addf %29, %32 : vector<16x128xf32>
    %cst_17 = arith.constant 5.000000e-01 : f32
    %34 = vector.broadcast %cst_17 : f32 to vector<16x128xf32>
    %35 = arith.mulf %34, %33 : vector<16x128xf32>
    %cst_18 = arith.constant 0.707106769 : f32
    %36 = vector.broadcast %cst_18 : f32 to vector<16x128xf32>
    %37 = arith.mulf %33, %36 : vector<16x128xf32>
    %38 = math.erf %37 : vector<16x128xf32>
    %cst_19 = arith.constant 1.000000e+00 : f32
    %39 = vector.broadcast %cst_19 : f32 to vector<16x128xf32>
    %40 = arith.addf %39, %38 : vector<16x128xf32>
    %41 = arith.mulf %35, %40 : vector<16x128xf32>
    %42 = arith.truncf %41 : vector<16x128xf32> to vector<16x128xbf16>
    %c0_20 = arith.constant 0 : index
    %c0_21 = arith.constant 0 : index
    %c0_22 = arith.constant 0 : index
    %43 = vector.load %arg7[%c0_20, %c0_21, %c0_22] : memref<1x128x32xbf16, #tpu.memory_space<vmem>>, vector<1x128x32xbf16>
    %44 = vector.shape_cast %43 : vector<1x128x32xbf16> to vector<128x32xbf16>
    %cst_23 = arith.constant dense<0.000000e+00> : vector<16x32xf32>
    %45 = tpu.matmul %42, %44, %cst_23 {dimension_numbers = #tpu.dot_dimension_numbers<[1], [0], [0], [1], [0, 0, 1, 1], [], []>} : vector<16x128xbf16>, vector<128x32xbf16>, vector<16x32xf32> -> vector<16x32xf32>
    %c0_24 = arith.constant 0 : index
    %c0_25 = arith.constant 0 : index
    %c0_26 = arith.constant 0 : index
    %46 = vector.load %arg8[%c0_24, %c0_25, %c0_26] : memref<1x1x32xf32, #tpu.memory_space<vmem>>, vector<1x1x32xf32>
    %47 = vector.shape_cast %46 : vector<1x1x32xf32> to vector<1x32xf32>
    %48 = vector.broadcast %47 : vector<1x32xf32> to vector<16x32xf32>
    %49 = arith.addf %45, %48 : vector<16x32xf32>
    %50 = arith.addf %3, %49 : vector<16x32xf32>
    %c0_27 = arith.constant 0 : index
    %c0_28 = arith.constant 0 : index
    %51 = vector.load %arg10[%c0_27, %c0_28] : memref<16x32xf32, #tpu.memory_space<vmem>>, vector<16x32xf32>
    tpu.vector_store %arg10[%c0_27, %c0_28], %50 {strides = array<i32>} : memref<16x32xf32, #tpu.memory_space<vmem>>, vector<16x32xf32>,
    %c1_i32 = arith.constant 1 : i32
    %52 = arith.cmpi eq, %arg1, %c1_i32 : i32
    %53 = arith.extui %52 : i1 to i32
    %c0_i32_29 = arith.constant 0 : i32
    %54 = arith.cmpi ne, %53, %c0_i32_29 : i32
    scf.if %54 {
      %c0_30 = arith.constant 0 : index
      %c0_31 = arith.constant 0 : index
      %55 = vector.load %arg10[%c0_30, %c0_31] : memref<16x32xf32, #tpu.memory_space<vmem>>, vector<16x32xf32>
      %c0_32 = arith.constant 0 : index
      %c0_33 = arith.constant 0 : index
      %56 = vector.load %arg9[%c0_32, %c0_33] : memref<16x32xf32, #tpu.memory_space<vmem>>, vector<16x32xf32>
      tpu.vector_store %arg9[%c0_32, %c0_33], %55 {strides = array<i32>} : memref<16x32xf32, #tpu.memory_space<vmem>>, vector<16x32xf32>,
    } else {
    }
    return
  }
  func.func @transform_0(%arg0: i32, %arg1: i32) -> (i32, i32) {
    %c0_i32 = arith.constant 0 : i32
    %c0_i32_0 = arith.constant 0 : i32
    return %arg0, %c0_i32 : i32, i32
  }
  func.func @transform_1(%arg0: i32, %arg1: i32) -> (i32, i32) {
    %c0_i32 = arith.constant 0 : i32
    %c0_i32_0 = arith.constant 0 : i32
    %c0_i32_1 = arith.constant 0 : i32
    return %c0_i32, %c0_i32_0 : i32, i32
  }
  func.func @transform_2(%arg0: i32, %arg1: i32) -> (i32, i32) {
    %c0_i32 = arith.constant 0 : i32
    %c0_i32_0 = arith.constant 0 : i32
    %c0_i32_1 = arith.constant 0 : i32
    return %c0_i32, %c0_i32_0 : i32, i32
  }
  func.func @transform_3(%arg0: i32, %arg1: i32) -> (i32, i32, i32) {
    %c0_i32 = arith.constant 0 : i32
    %c0_i32_0 = arith.constant 0 : i32
    %c0_i32_1 = arith.constant 0 : i32
    return %arg1, %c0_i32, %c0_i32_0 : i32, i32, i32
  }
  func.func @transform_4(%arg0: i32, %arg1: i32) -> (i32, i32, i32) {
    %c0_i32 = arith.constant 0 : i32
    %c0_i32_0 = arith.constant 0 : i32
    %c0_i32_1 = arith.constant 0 : i32
    return %arg1, %c0_i32, %c0_i32_0 : i32, i32, i32
  }
  func.func @transform_5(%arg0: i32, %arg1: i32) -> (i32, i32, i32) {
    %c0_i32 = arith.constant 0 : i32
    %c0_i32_0 = arith.constant 0 : i32
    %c0_i32_1 = arith.constant 0 : i32
    return %arg1, %c0_i32, %c0_i32_0 : i32, i32, i32
  }
  func.func @transform_6(%arg0: i32, %arg1: i32) -> (i32, i32, i32) {
    %c0_i32 = arith.constant 0 : i32
    %c0_i32_0 = arith.constant 0 : i32
    %c0_i32_1 = arith.constant 0 : i32
    return %arg1, %c0_i32, %c0_i32_0 : i32, i32, i32
  }
  func.func @transform_7(%arg0: i32, %arg1: i32) -> (i32, i32) {
    %c0_i32 = arith.constant 0 : i32
    %c0_i32_0 = arith.constant 0 : i32
    return %arg0, %c0_i32 : i32, i32
  }
}

</mosaic_0001>

<llo_original>
// kernel: tpu_custom_call.1
$region0: #{tpu_custom_call.1}
  #allocation0 [shape = 'u32[]', space=smem, size = 0x4, offset = 0x4, fixed_abs, tag = 'smem constant byte address 0x4 - core index']
  #allocation1 [shape = 'u32[72,128]{1,0:T(1,128)}', space=vmem, size = 0x9000, scoped, tag = 'internal scratch']
  #allocation2 [shape = 'f32[16,32]{1,0:T(8,128)}', space=vmem, size = 0x2000, scoped, tag = 'scratch operand']
  %s0 = inlined_call_operand.vmem [shape: f32[16,32], index: 0, kind: input, shape index: {}]
  %s1 = inlined_call_operand.vmem [shape: f32[1,32], index: 1, kind: input, shape index: {}]
  %s2 = inlined_call_operand.vmem [shape: f32[1,32], index: 2, kind: input, shape index: {}]
  %s3 = inlined_call_operand.vmem [shape: bf16[2,32,128], index: 3, kind: input, shape index: {}]
  %s4 = inlined_call_operand.vmem [shape: f32[2,1,128], index: 4, kind: input, shape index: {}]
  %s5 = inlined_call_operand.vmem [shape: bf16[2,128,32], index: 5, kind: input, shape index: {}]
  %s6 = inlined_call_operand.vmem [shape: f32[2,1,32], index: 6, kind: input, shape index: {}]
  %s7 = inlined_call_operand.hbm [shape: f32[16,32], index: 7, kind: output, shape index: {}]
  %s8 = sld [smem:[#allocation0]]
  $region69: #{tpu_custom_call.1} parent=0
    _
  %s10 = ssub.s32 1, %s8
  %s11 = scalar_select 0, %s10, %s8
  $region1: #{tpu_custom_call.1} parent=0
    #allocation3 [shape = 'u8[8192]{0}', space=vmem, size = 0x2000, scoped, tag = 'output window, operand 0, single buffered']
    #allocation4 [shape = 's32[2]{0}', space=sflag, size = 0x8, scoped, tag = 'scoped memory for tpu_custom_call.1']
    %12 = vsyncpa [#allocation4], 0
    loop: start=0, step=1, limit=4
    $region2: #{tpu_custom_call.1} parent=1 // loop_pre_header
      _
    $region3: #{tpu_custom_call.1} parent=1 // loop_header
      %s14 = sphi 0, %s18
      %p15 = scmp.ge.s32.totalorder %s14, 4
      %s21 = sphi 0, %s33
      %s22 = sphi 0, %s29
      %s23 = sphi 0, %s21
      %s24 = sphi 0, %s22
      %s25 = sphi 0, %s23
      %s26 = sphi 0, %s24
      %s36 = sphi 0, %s38
      %s39 = sphi 0, %s36
      %s40 = sphi 0, %s39
      %s56 = sphi 0, %s40
      %s60 = sphi 0, %s60
      %s62 = sphi 0, %s60
      %s63 = sphi 0, %s62
      %s77 = sphi 0, %s63
      %s81 = sphi 0, %s81
      %s83 = sphi 0, %s81
      %s84 = sphi 0, %s83
      %s98 = sphi 0, %s84
      %s104 = sphi 0, %s106
      %s107 = sphi 0, %s104
      %s108 = sphi 0, %s107
      %s124 = sphi 0, %s108
      %s130 = sphi 0, %s132
      %s133 = sphi 0, %s130
      %s134 = sphi 0, %s133
      %s150 = sphi 0, %s134
      %s156 = sphi 0, %s158
      %s159 = sphi 0, %s156
      %s160 = sphi 0, %s159
      %s176 = sphi 0, %s160
      %s182 = sphi 0, %s184
      %s185 = sphi 0, %s182
      %s186 = sphi 0, %s185
      %s202 = sphi 0, %s186
      %s208 = sphi 0, %s210
      %s211 = sphi 0, %s208
      %s212 = sphi 0, %s211
      %s228 = sphi 0, %s212
    $region4: #{tpu_custom_call.1} parent=1 // loop_header_branch
      %17 = sbr.rel (%p15) target = $region8
    $region5: #{tpu_custom_call.1} parent=1 // loop_body
      %s19 = ssub.s32 %s14, 1
      %s20 = ssub.s32 %s14, 2
      %s27 = sadd.s32 1, %s22
      %p28 = scmp.ge.s32.totalorder %s27, 2
      %s29 = scalar_select %p28, 0, %s27
      %s30 = sadd.s32 1, %s21
      %s31 = scalar_select %p28, %s30, %s21
      %p32 = scmp.ge.s32.totalorder %s31, 1
      %s33 = scalar_select %p32, 0, %s31
      %s34 = ssub.s32 %s21, %s33
      %p35 = scmp.eq.s32.totalorder %s34, 0
      %s37 = sadd.s32 %s36, 1
      %s38 = scalar_select %p35, %s36, %s37
      %p41 = pneg %p35
      %p42 = scmp.eq.s32.totalorder %s14, 1
      %p43 = por %p41, %p42
      %p44 = scmp.ne.s32.totalorder %s36, %s39
      %p45 = scmp.eq.s32.totalorder %s14, 0
      %p46 = por %p44, %p45
      %p47 = scmp.ne.s32.totalorder %s36, %s39
      %p48 = scmp.eq.s32.totalorder %s19, 1
      %p49 = por %p47, %p48
      %p50 = scmp.ne.s32.totalorder %s39, %s40
      %p51 = scmp.eq.s32.totalorder %s19, 0
      %p52 = por %p50, %p51
      %p53 = scmp.ne.s32.totalorder %s39, %s40
      %p54 = scmp.eq.s32.totalorder %s20, 1
      %p55 = por %p53, %p54
      %p57 = scmp.ne.s32.totalorder %s40, %s56
      %p58 = scmp.eq.s32.totalorder %s20, 0
      %p59 = por %p57, %p58
      %s61 = sadd.s32 %s60, 1
      %p64 = scmp.eq.s32.totalorder %s14, 1
      %p65 = scmp.ne.s32.totalorder %s60, %s62
      %p66 = scmp.eq.s32.totalorder %s14, 0
      %p67 = por %p65, %p66
      %p68 = scmp.ne.s32.totalorder %s60, %s62
      %p69 = scmp.eq.s32.totalorder %s19, 1
      %p70 = por %p68, %p69
      %p71 = scmp.ne.s32.totalorder %s62, %s63
      %p72 = scmp.eq.s32.totalorder %s19, 0
      %p73 = por %p71, %p72
      %p74 = scmp.ne.s32.totalorder %s62, %s63
      %p75 = scmp.eq.s32.totalorder %s20, 1
      %p76 = por %p74, %p75
      %p78 = scmp.ne.s32.totalorder %s63, %s77
      %p79 = scmp.eq.s32.totalorder %s20, 0
      %p80 = por %p78, %p79
      %s82 = sadd.s32 %s81, 1
      %p85 = scmp.eq.s32.totalorder %s14, 1
      %p86 = scmp.ne.s32.totalorder %s81, %s83
      %p87 = scmp.eq.s32.totalorder %s14, 0
      %p88 = por %p86, %p87
      %p89 = scmp.ne.s32.totalorder %s81, %s83
      %p90 = scmp.eq.s32.totalorder %s19, 1
      %p91 = por %p89, %p90
      %p92 = scmp.ne.s32.totalorder %s83, %s84
      %p93 = scmp.eq.s32.totalorder %s19, 0
      %p94 = por %p92, %p93
      %p95 = scmp.ne.s32.totalorder %s83, %s84
      %p96 = scmp.eq.s32.totalorder %s20, 1
      %p97 = por %p95, %p96
      %p99 = scmp.ne.s32.totalorder %s84, %s98
      %p100 = scmp.eq.s32.totalorder %s20, 0
      %p101 = por %p99, %p100
      %s102 = ssub.s32 %s22, %s29
      %p103 = scmp.eq.s32.totalorder %s102, 0
      %s105 = sadd.s32 %s104, 1
      %s106 = scalar_select %p103, %s104, %s105
      %p109 = pneg %p103
      %p110 = scmp.eq.s32.totalorder %s14, 1
      %p111 = por %p109, %p110
      %p112 = scmp.ne.s32.totalorder %s104, %s107
      %p113 = scmp.eq.s32.totalorder %s14, 0
      %p114 = por %p112, %p113
      %p115 = scmp.ne.s32.totalorder %s104, %s107
      %p116 = scmp.eq.s32.totalorder %s19, 1
      %p117 = por %p115, %p116
      %p118 = scmp.ne.s32.totalorder %s107, %s108
      %p119 = scmp.eq.s32.totalorder %s19, 0
      %p120 = por %p118, %p119
      %p121 = scmp.ne.s32.totalorder %s107, %s108
      %p122 = scmp.eq.s32.totalorder %s20, 1
      %p123 = por %p121, %p122
      %p125 = scmp.ne.s32.totalorder %s108, %s124
      %p126 = scmp.eq.s32.totalorder %s20, 0
      %p127 = por %p125, %p126
      %s128 = ssub.s32 %s22, %s29
      %p129 = scmp.eq.s32.totalorder %s128, 0
      %s131 = sadd.s32 %s130, 1
      %s132 = scalar_select %p129, %s130, %s131
      %p135 = pneg %p129
      %p136 = scmp.eq.s32.totalorder %s14, 1
      %p137 = por %p135, %p136
      %p138 = scmp.ne.s32.totalorder %s130, %s133
      %p139 = scmp.eq.s32.totalorder %s14, 0
      %p140 = por %p138, %p139
      %p141 = scmp.ne.s32.totalorder %s130, %s133
      %p142 = scmp.eq.s32.totalorder %s19, 1
      %p143 = por %p141, %p142
      %p144 = scmp.ne.s32.totalorder %s133, %s134
      %p145 = scmp.eq.s32.totalorder %s19, 0
      %p146 = por %p144, %p145
      %p147 = scmp.ne.s32.totalorder %s133, %s134
      %p148 = scmp.eq.s32.totalorder %s20, 1
      %p149 = por %p147, %p148
      %p151 = scmp.ne.s32.totalorder %s134, %s150
      %p152 = scmp.eq.s32.totalorder %s20, 0
      %p153 = por %p151, %p152
      %s154 = ssub.s32 %s22, %s29
      %p155 = scmp.eq.s32.totalorder %s154, 0
      %s157 = sadd.s32 %s156, 1
      %s158 = scalar_select %p155, %s156, %s157
      %p161 = pneg %p155
      %p162 = scmp.eq.s32.totalorder %s14, 1
      %p163 = por %p161, %p162
      %p164 = scmp.ne.s32.totalorder %s156, %s159
      %p165 = scmp.eq.s32.totalorder %s14, 0
      %p166 = por %p164, %p165
      %p167 = scmp.ne.s32.totalorder %s156, %s159
      %p168 = scmp.eq.s32.totalorder %s19, 1
      %p169 = por %p167, %p168
      %p170 = scmp.ne.s32.totalorder %s159, %s160
      %p171 = scmp.eq.s32.totalorder %s19, 0
      %p172 = por %p170, %p171
      %p173 = scmp.ne.s32.totalorder %s159, %s160
      %p174 = scmp.eq.s32.totalorder %s20, 1
      %p175 = por %p173, %p174
      %p177 = scmp.ne.s32.totalorder %s160, %s176
      %p178 = scmp.eq.s32.totalorder %s20, 0
      %p179 = por %p177, %p178
      %s180 = ssub.s32 %s22, %s29
      %p181 = scmp.eq.s32.totalorder %s180, 0
      %s183 = sadd.s32 %s182, 1
      %s184 = scalar_select %p181, %s182, %s183
      %p187 = pneg %p181
      %p188 = scmp.eq.s32.totalorder %s14, 1
      %p189 = por %p187, %p188
      %p190 = scmp.ne.s32.totalorder %s182, %s185
      %p191 = scmp.eq.s32.totalorder %s14, 0
      %p192 = por %p190, %p191
      %p193 = scmp.ne.s32.totalorder %s182, %s185
      %p194 = scmp.eq.s32.totalorder %s19, 1
      %p195 = por %p193, %p194
      %p196 = scmp.ne.s32.totalorder %s185, %s186
      %p197 = scmp.eq.s32.totalorder %s19, 0
      %p198 = por %p196, %p197
      %p199 = scmp.ne.s32.totalorder %s185, %s186
      %p200 = scmp.eq.s32.totalorder %s20, 1
      %p201 = por %p199, %p200
      %p203 = scmp.ne.s32.totalorder %s186, %s202
      %p204 = scmp.eq.s32.totalorder %s20, 0
      %p205 = por %p203, %p204
      %s206 = ssub.s32 %s21, %s33
      %p207 = scmp.eq.s32.totalorder %s206, 0
      %s209 = sadd.s32 %s208, 1
      %s210 = scalar_select %p207, %s208, %s209
      %p213 = pneg %p207
      %p214 = scmp.eq.s32.totalorder %s14, 1
      %p215 = por %p213, %p214
      %p216 = scmp.ne.s32.totalorder %s208, %s211
      %p217 = scmp.eq.s32.totalorder %s14, 0
      %p218 = por %p216, %p217
      %p219 = scmp.ne.s32.totalorder %s208, %s211
      %p220 = scmp.eq.s32.totalorder %s19, 1
      %p221 = por %p219, %p220
      %p222 = scmp.ne.s32.totalorder %s211, %s212
      %p223 = scmp.eq.s32.totalorder %s19, 0
      %p224 = por %p222, %p223
      %p225 = scmp.ne.s32.totalorder %s211, %s212
      %p226 = scmp.eq.s32.totalorder %s20, 1
      %p227 = por %p225, %p226
      %p229 = scmp.ne.s32.totalorder %s212, %s228
      %p230 = scmp.eq.s32.totalorder %s20, 0
      %p231 = por %p229, %p230
      %p232 = scmp.le.s32.totalorder 1, %s14
      %p233 = scmp.lt.s32.totalorder %s14, 3
      %p234 = pnand %p232, %p233
      %p235 = pneg %p234
      // Predicated region
      $region9: #{tpu_custom_call.1} parent=5 // pred_check
        _
      $region10: #{tpu_custom_call.1} parent=5 // pred_check_branch
        %237 = sbr.rel (%p234) target = $region12
      $region11: #{tpu_custom_call.1} parent=5 // pred_region
        %s238 = ssub.s32 %s14, 1
        // Predicated region
        $region13: #{tpu_custom_call.1} parent=11 // pred_check
          %p239 = pneg %p52
        $region14: #{tpu_custom_call.1} parent=11 // pred_check_branch
          %241 = sbr.rel (%p239) target = $region16
        $region15: #{tpu_custom_call.1} parent=11 // pred_region
          %s242 = smul.u32 2, %s23
          %p243 = scmp.lt.s32.totalorder %s242, 1
          %s244 = scalar_select %p243, %s242, 1
          %s245 = smul.addr %s244, 8
          %s246 = scalar_lea.vmem %s0, %s245
          %s247 = smul.u32 2, %s23
        $region16: #{tpu_custom_call.1} parent=11 // pred_fallthru
          _
        // Predicated region
        $region17: #{tpu_custom_call.1} parent=11 // pred_check
          %p248 = pneg %p73
        $region18: #{tpu_custom_call.1} parent=11 // pred_check_branch
          %250 = sbr.rel (%p248) target = $region20
        $region19: #{tpu_custom_call.1} parent=11 // pred_region
          _
        $region20: #{tpu_custom_call.1} parent=11 // pred_fallthru
          _
        // Predicated region
        $region21: #{tpu_custom_call.1} parent=11 // pred_check
          %p251 = pneg %p94
        $region22: #{tpu_custom_call.1} parent=11 // pred_check_branch
          %253 = sbr.rel (%p251) target = $region24
        $region23: #{tpu_custom_call.1} parent=11 // pred_region
          _
        $region24: #{tpu_custom_call.1} parent=11 // pred_fallthru
          _
      $region12: #{tpu_custom_call.1} parent=5 // pred_fallthru
        _
      %p254 = scmp.lt.s32.totalorder %s14, 2
      // Predicated region
      $region25: #{tpu_custom_call.1} parent=5 // pred_check
        %p255 = pneg %p254
      $region26: #{tpu_custom_call.1} parent=5 // pred_check_branch
        %257 = sbr.rel (%p255) target = $region28
      $region27: #{tpu_custom_call.1} parent=5 // pred_region
        // Predicated region
        $region29: #{tpu_custom_call.1} parent=27 // pred_check
          %p258 = pneg %p114
        $region30: #{tpu_custom_call.1} parent=27 // pred_check_branch
          %260 = sbr.rel (%p258) target = $region32
        $region31: #{tpu_custom_call.1} parent=27 // pred_region
          %p261 = scmp.lt.s32.totalorder %s22, 1
          %s262 = scalar_select %p261, %s22, 1
          %s263 = smul.addr %s262, 4
          %s264 = smul.addr %s263, 4
          %s265 = scalar_lea.vmem %s3, %s264
        $region32: #{tpu_custom_call.1} parent=27 // pred_fallthru
          _
        // Predicated region
        $region33: #{tpu_custom_call.1} parent=27 // pred_check
          %p266 = pneg %p140
        $region34: #{tpu_custom_call.1} parent=27 // pred_check_branch
          %268 = sbr.rel (%p266) target = $region36
        $region35: #{tpu_custom_call.1} parent=27 // pred_region
          %p269 = scmp.lt.s32.totalorder %s22, 1
          %s270 = scalar_select %p269, %s22, 1
          %s271 = scalar_lea.vmem %s4, %s270
        $region36: #{tpu_custom_call.1} parent=27 // pred_fallthru
          _
        // Predicated region
        $region37: #{tpu_custom_call.1} parent=27 // pred_check
          %p272 = pneg %p166
        $region38: #{tpu_custom_call.1} parent=27 // pred_check_branch
          %274 = sbr.rel (%p272) target = $region40
        $region39: #{tpu_custom_call.1} parent=27 // pred_region
          %p275 = scmp.lt.s32.totalorder %s22, 1
          %s276 = scalar_select %p275, %s22, 1
          %s277 = smul.addr %s276, 16
          %s278 = smul.addr %s277, 4
          %s279 = scalar_lea.vmem %s5, %s278
        $region40: #{tpu_custom_call.1} parent=27 // pred_fallthru
          _
        // Predicated region
        $region41: #{tpu_custom_call.1} parent=27 // pred_check
          %p280 = pneg %p192
        $region42: #{tpu_custom_call.1} parent=27 // pred_check_branch
          %282 = sbr.rel (%p280) target = $region44
        $region43: #{tpu_custom_call.1} parent=27 // pred_region
          %p283 = scmp.lt.s32.totalorder %s22, 1
          %s284 = scalar_select %p283, %s22, 1
          %s285 = scalar_lea.vmem %s6, %s284
        $region44: #{tpu_custom_call.1} parent=27 // pred_fallthru
          _
      $region28: #{tpu_custom_call.1} parent=5 // pred_fallthru
        _
      %p286 = scmp.le.s32.totalorder 1, %s14
      %p287 = scmp.lt.s32.totalorder %s14, 3
      %p288 = pnand %p286, %p287
      %p289 = pneg %p288
      // Predicated region
      $region45: #{tpu_custom_call.1} parent=5 // pred_check
        _
      $region46: #{tpu_custom_call.1} parent=5 // pred_check_branch
        %291 = sbr.rel (%p288) target = $region48
      $region47: #{tpu_custom_call.1} parent=5 // pred_region
        %s292 = ssub.s32 %s14, 1
        %s293 = smul.u32 2, %s23
        %p294 = scmp.lt.s32.totalorder %s293, 1
        %s295 = scalar_select %p294, %s293, 1
        %s296 = smul.addr %s295, 8
        %s297 = scalar_lea.vmem %s0, %s296
        %p298 = pneg %p52
        %p299 = pneg %p49
        %p300 = pneg %p73
        %p301 = pneg %p70
        %p302 = pneg %p94
        %p303 = pneg %p91
        %p304 = scmp.lt.s32.totalorder %s24, 1
        %s305 = scalar_select %p304, %s24, 1
        %s306 = smul.addr %s305, 4
        %s307 = smul.addr %s306, 4
        %s308 = scalar_lea.vmem %s3, %s307
        %p309 = pneg %p120
        %p310 = pneg %p117
        %p311 = scmp.lt.s32.totalorder %s24, 1
        %s312 = scalar_select %p311, %s24, 1
        %s313 = scalar_lea.vmem %s4, %s312
        %p314 = pneg %p146
        %p315 = pneg %p143
        %p316 = scmp.lt.s32.totalorder %s24, 1
        %s317 = scalar_select %p316, %s24, 1
        %s318 = smul.addr %s317, 16
        %s319 = smul.addr %s318, 4
        %s320 = scalar_lea.vmem %s5, %s319
        %p321 = pneg %p172
        %p322 = pneg %p169
        %p323 = scmp.lt.s32.totalorder %s24, 1
        %s324 = scalar_select %p323, %s24, 1
        %s325 = scalar_lea.vmem %s6, %s324
        %p326 = pneg %p198
        %p327 = pneg %p195
        %p328 = pneg %p224
        %p329 = pneg %p221
        %s330 = smul.u32 2, %s23
        %p331 = scmp.lt.s32.totalorder %s330, 1
        %s332 = scalar_select %p331, %s330, 1
        %s333 = smul.addr %s332, 8
        %s334 = scalar_lea.vmem %s0, %s333
        %s335 = smul.u32 2, %s23
        %p336 = scmp.lt.s32.totalorder %s24, 1
        %s337 = scalar_select %p336, %s24, 1
        %s338 = smul.addr %s337, 4
        %s339 = smul.addr %s338, 4
        %s340 = scalar_lea.vmem %s3, %s339
        %p341 = scmp.lt.s32.totalorder %s24, 1
        %s342 = scalar_select %p341, %s24, 1
        %s343 = scalar_lea.vmem %s4, %s342
        %p344 = scmp.lt.s32.totalorder %s24, 1
        %s345 = scalar_select %p344, %s24, 1
        %s346 = smul.addr %s345, 16
        %s347 = smul.addr %s346, 4
        %s348 = scalar_lea.vmem %s5, %s347
        %p349 = scmp.lt.s32.totalorder %s24, 1
        %s350 = scalar_select %p349, %s24, 1
        %s351 = scalar_lea.vmem %s6, %s350
        %s352 = smul.u32 2, %s23
        %p354 = scmp.eq.s32.totalorder %s24, 0
        // Predicated region
        $region49: #{tpu_custom_call.1} parent=47 // pred_check
          %p355 = pneg %p354
        $region50: #{tpu_custom_call.1} parent=47 // pred_check_branch
          %357 = sbr.rel (%p355) target = $region52
        $region51: #{tpu_custom_call.1} parent=47 // pred_region
          %v358 = vld [vmem:[%s334] sm:$0xff]
          %v359 = vld [vmem:[%s334 + $0x8] sm:$0xff]
          %vm360 = vcmask 261120
          %361 = vst.msk [vmem:[#allocation2] sm:$0xff] %vm360, %v358
          %362 = vst.msk [vmem:[#allocation2 + $0x8] sm:$0xff] %vm360, %v359
        $region52: #{tpu_custom_call.1} parent=47 // pred_fallthru
          _
        %v363 = vld [vmem:[#allocation2] sm:$0xff]
        %v364 = vld [vmem:[#allocation2 + $0x8] sm:$0xff]
        %v365 = vld [vmem:[%s1] sm:$0x1]
        %v366 = vld [vmem:[%s2] sm:$0x1]
        %vm367 = vcmask 261120
        %v368 = vsel %vm367, %v363, 0.0
        %369 = vadd.xlane.f32.xlu0 %v368
        %v370 = vpop.xlane.xlu0 %369
        %v371 = vsel %vm367, %v364, 0.0
        %372 = vadd.xlane.f32.xlu0 %v371
        %v373 = vpop.xlane.xlu0 %372
        %v374 = vrcp.pop 32.0
        %v375 = vmul.f32 32.0, %v374
        %v376 = vsub.f32 1.0, %v375
        %v377 = vmul.f32 %v374, %v376
        %v378 = vadd.f32 %v374, %v377
        %vm379 = vweird.f32 %v374
        %v380 = vsel %vm379, %v374, %v378
        %v381 = vmul.f32 %v370, %v380
        %v382 = vmul.f32 %v373, %v380
        %v383 = vsub.f32 %v363, %v381
        %v384 = vsub.f32 %v364, %v382
        %v385 = vmul.f32 %v383, %v383
        %v386 = vmul.f32 %v384, %v384
        %v387 = vsel %vm367, %v385, 0.0
        %388 = vadd.xlane.f32.xlu0 %v387
        %v389 = vpop.xlane.xlu0 %388
        %v390 = vsel %vm367, %v386, 0.0
        %391 = vadd.xlane.f32.xlu0 %v390
        %v392 = vpop.xlane.xlu0 %391
        %v393 = vmul.f32 %v389, %v380
        %v394 = vmul.f32 %v392, %v380
        %v395 = vadd.f32 %v393, 1e-05
        %v396 = vadd.f32 %v394, 1e-05
        %v397 = vrsqrt.pop %v395
        %v398 = vmul.f32 %v397, %v395
        %v399 = vmul.f32 %v398, %v397
        %v400 = vmul.f32 0.5, %v399
        %v401 = vsub.f32 1.5, %v400
        %v402 = vmul.f32 %v397, %v401
        %vm403 = vweird.f32 %v395
        %vm404 = vweird.f32 %v397
        %vm405 = vmor %vm403, %vm404
        %v406 = vsel %vm405, %v397, %v402
        %v407 = vrsqrt.pop %v396
        %v408 = vmul.f32 %v407, %v396
        %v409 = vmul.f32 %v408, %v407
        %v410 = vmul.f32 0.5, %v409
        %v411 = vsub.f32 1.5, %v410
        %v412 = vmul.f32 %v407, %v411
        %vm413 = vweird.f32 %v396
        %vm414 = vweird.f32 %v407
        %vm415 = vmor %vm413, %vm414
        %v416 = vsel %vm415, %v407, %v412
        %v417 = vmul.f32 %v383, %v406
        %v418 = vmul.f32 %v384, %v416
        %v420 = vperm.slane %v365, 0
        %v422 = vmul.f32 %v417, %v420
        %v423 = vmul.f32 %v418, %v420
        %v425 = vperm.slane %v366, 0
        %v427 = vadd.f32 %v422, %v425
        %v428 = vadd.f32 %v423, %v425
        %v429 = vpack.c.bf16 %v428, %v427
        %v430 = vld [vmem:[%s340] sm:$0xf]
        %v431 = vld [vmem:[%s340 + $0x4] sm:$0xf]
        %v432 = vld [vmem:[%s340 + $0x8] sm:$0xf]
        %v433 = vld [vmem:[%s340 + $0xc] sm:$0xf]
        %v434 = vld [vmem:[%s343] sm:$0x1]
        %v436 = vperm.slane %v434, 0
        %v442 = vunpack.c.l.b16 %v430
        %v443 = vunpack.c.l.b16 %v431
        %v444 = vunpack.c.l.b16 %v432
        %v445 = vunpack.c.l.b16 %v433
        %v446 = vpack.c.b16 %v443, %v442
        %v447 = vpack.c.b16 %v445, %v444
        %v451 = vsel %vm367, %v429, 0
        %453 = vmatpush.bf16.msra.mxu0 0
        %454 = vmatpush.bf16.msra.mxu0 0
        %455 = vmatpush.bf16.msra.mxu0 0
        %456 = vmatpush.bf16.msra.mxu0 0
        %457 = vmatpush.bf16.msra.mxu0 0
        %458 = vmatpush.bf16.msra.mxu0 0
        %459 = vmatpush.bf16.msra.mxu0 %v447
        %460 = vmatpush.bf16.msra.mxu0 %v446
        %461 = vmatmul.bf16.gmra.mxu0 %v451
        %v462 = vpop.f32.mrf.mxu0
        %v463 = vadd.f32 %v436, %v462
        %v464 = vpop.f32.mrf.mxu0
        %v465 = vadd.f32 %v436, %v464
        %466 = vdwg.mxu0
        %v467 = vmul.f32 %v463, 0.5
        %v468 = vmul.f32 %v465, 0.5
        %v469 = vmul.f32 %v463, 0.70710677
        %v470 = vmul.f32 %v465, 0.70710677
        %v471 = vmul.f32 %v469, %v469
        %v472 = vmin.f32 16.0, %v471
        %v473 = vmul.f32 %v472, 2.1237322e-06
        %v474 = vadd.f32 %v473, 0.00028619796
        %v475 = vmul.f32 %v472, %v474
        %v476 = vadd.f32 %v475, 0.0036580483
        %v477 = vmul.f32 %v472, %v476
        %v478 = vadd.f32 %v477, 0.05243302
        %v479 = vmul.f32 %v472, %v478
        %v480 = vadd.f32 %v479, 0.18741608
        %v481 = vmul.f32 %v472, %v480
        %v482 = vadd.f32 %v481, 1.1283791
        %v483 = vmul.f32 %v469, %v482
        %v484 = vmul.f32 %v472, 3.8918573e-05
        %v485 = vadd.f32 %v484, 0.001143296
        %v486 = vmul.f32 %v472, %v485
        %v487 = vadd.f32 %v486, 0.014752088
        %v488 = vmul.f32 %v472, %v487
        %v489 = vadd.f32 %v488, 0.112945676
        %v490 = vmul.f32 %v472, %v489
        %v491 = vadd.f32 %v490, 0.4994258
        %v492 = vmul.f32 %v472, %v491
        %v493 = vadd.f32 %v492, 1.0
        %v494 = vrcp.pop %v493
        %v495 = vmul.f32 %v493, %v494
        %v496 = vsub.f32 1.0, %v495
        %v497 = vmul.f32 %v494, %v496
        %v498 = vadd.f32 %v494, %v497
        %vm499 = vweird.f32 %v493
        %vm500 = vweird.f32 %v494
        %vm501 = vmor %vm499, %vm500
        %v502 = vsel %vm501, %v494, %v498
        %v503 = vand.u32 2147483647, %v493
        %vm504 = vcmp.eq.f32.partialorder %v503, 8.507059e+37
        %v505 = vand.u32 %v493, 2147483648
        %v506 = vor.u32 1.1754944e-38, %v505
        %v507 = vsel %vm504, %v506, %v502
        %v508 = vmul.f32 %v483, %v507
        %v509 = vmin.f32 %v508, 1.0
        %v510 = vmax.f32 %v509, -1.0
        %v511 = vmul.f32 %v470, %v470
        %v512 = vmin.f32 16.0, %v511
        %v513 = vmul.f32 %v512, 2.1237322e-06
        %v514 = vadd.f32 %v513, 0.00028619796
        %v515 = vmul.f32 %v512, %v514
        %v516 = vadd.f32 %v515, 0.0036580483
        %v517 = vmul.f32 %v512, %v516
        %v518 = vadd.f32 %v517, 0.05243302
        %v519 = vmul.f32 %v512, %v518
        %v520 = vadd.f32 %v519, 0.18741608
        %v521 = vmul.f32 %v512, %v520
        %v522 = vadd.f32 %v521, 1.1283791
        %v523 = vmul.f32 %v470, %v522
        %v524 = vmul.f32 %v512, 3.8918573e-05
        %v525 = vadd.f32 %v524, 0.001143296
        %v526 = vmul.f32 %v512, %v525
        %v527 = vadd.f32 %v526, 0.014752088
        %v528 = vmul.f32 %v512, %v527
        %v529 = vadd.f32 %v528, 0.112945676
        %v530 = vmul.f32 %v512, %v529
        %v531 = vadd.f32 %v530, 0.4994258
        %v532 = vmul.f32 %v512, %v531
        %v533 = vadd.f32 %v532, 1.0
        %v534 = vrcp.pop %v533
        %v535 = vmul.f32 %v533, %v534
        %v536 = vsub.f32 1.0, %v535
        %v537 = vmul.f32 %v534, %v536
        %v538 = vadd.f32 %v534, %v537
        %vm539 = vweird.f32 %v533
        %vm540 = vweird.f32 %v534
        %vm541 = vmor %vm539, %vm540
        %v542 = vsel %vm541, %v534, %v538
        %v543 = vand.u32 2147483647, %v533
        %vm544 = vcmp.eq.f32.partialorder %v543, 8.507059e+37
        %v545 = vand.u32 %v533, 2147483648
        %v546 = vor.u32 1.1754944e-38, %v545
        %v547 = vsel %vm544, %v546, %v542
        %v548 = vmul.f32 %v523, %v547
        %v549 = vmin.f32 %v548, 1.0
        %v550 = vmax.f32 %v549, -1.0
        %v551 = vadd.f32 %v510, 1.0
        %v552 = vadd.f32 %v550, 1.0
        %v553 = vmul.f32 %v467, %v551
        %v554 = vmul.f32 %v468, %v552
        %v555 = vpack.c.bf16 %v554, %v553
        %v556 = vld [vmem:[%s348] sm:$0xf]
        %v557 = vld [vmem:[%s348 + $0x4] sm:$0xf]
        %v558 = vld [vmem:[%s348 + $0x8] sm:$0xf]
        %v559 = vld [vmem:[%s348 + $0xc] sm:$0xf]
        %v560 = vld [vmem:[%s348 + $0x10] sm:$0xf]
        %v561 = vld [vmem:[%s348 + $0x14] sm:$0xf]
        %v562 = vld [vmem:[%s348 + $0x18] sm:$0xf]
        %v563 = vld [vmem:[%s348 + $0x1c] sm:$0xf]
        %v564 = vld [vmem:[%s348 + $0x20] sm:$0xf]
        %v565 = vld [vmem:[%s348 + $0x24] sm:$0xf]
        %v566 = vld [vmem:[%s348 + $0x28] sm:$0xf]
        %v567 = vld [vmem:[%s348 + $0x2c] sm:$0xf]
        %v568 = vld [vmem:[%s348 + $0x30] sm:$0xf]
        %v569 = vld [vmem:[%s348 + $0x34] sm:$0xf]
        %v570 = vld [vmem:[%s348 + $0x38] sm:$0xf]
        %v571 = vld [vmem:[%s348 + $0x3c] sm:$0xf]
        %v572 = vld [vmem:[%s351] sm:$0x1]
        %v574 = vperm.slane %v572, 0
        %v592 = vunpack.c.l.b16 %v556
        %v593 = vunpack.c.l.b16 %v557
        %v594 = vunpack.c.l.b16 %v558
        %v595 = vunpack.c.l.b16 %v559
        %v596 = vunpack.c.l.b16 %v560
        %v597 = vunpack.c.l.b16 %v561
        %v598 = vunpack.c.l.b16 %v562
        %v599 = vunpack.c.l.b16 %v563
        %v600 = vunpack.c.l.b16 %v564
        %v601 = vunpack.c.l.b16 %v565
        %v602 = vunpack.c.l.b16 %v566
        %v603 = vunpack.c.l.b16 %v567
        %v604 = vunpack.c.l.b16 %v568
        %v605 = vunpack.c.l.b16 %v569
        %v606 = vunpack.c.l.b16 %v570
        %v607 = vunpack.c.l.b16 %v571
        %v608 = vpack.c.b16 %v593, %v592
        %v609 = vpack.c.b16 %v595, %v594
        %v610 = vpack.c.b16 %v597, %v596
        %v611 = vpack.c.b16 %v599, %v598
        %v612 = vpack.c.b16 %v601, %v600
        %v613 = vpack.c.b16 %v603, %v602
        %v614 = vpack.c.b16 %v605, %v604
        %v615 = vpack.c.b16 %v607, %v606
        %624 = vmatpush.bf16.msra.mxu0 %v615
        %625 = vmatpush.bf16.msra.mxu0 %v614
        %626 = vmatpush.bf16.msra.mxu0 %v613
        %627 = vmatpush.bf16.msra.mxu0 %v612
        %628 = vmatpush.bf16.msra.mxu0 %v611
        %629 = vmatpush.bf16.msra.mxu0 %v610
        %630 = vmatpush.bf16.msra.mxu0 %v609
        %631 = vmatpush.bf16.msra.mxu0 %v608
        %632 = vmatmul.bf16.gmra.mxu0 %v555
        %v633 = vpop.f32.mrf.mxu0
        %v634 = vadd.f32 %v574, %v633
        %v635 = vpop.f32.mrf.mxu0
        %v636 = vadd.f32 %v574, %v635
        %637 = vdwg.mxu0
        %v638 = vadd.f32 %v363, %v634
        %v639 = vadd.f32 %v364, %v636
        %640 = vst.msk [vmem:[#allocation2] sm:$0xff] %vm367, %v638
        %641 = vst.msk [vmem:[#allocation2 + $0x8] sm:$0xff] %vm367, %v639
        %p642 = scmp.eq.s32.totalorder %s24, 1
        // Predicated region
        $region53: #{tpu_custom_call.1} parent=47 // pred_check
          %p643 = pneg %p642
        $region54: #{tpu_custom_call.1} parent=47 // pred_check_branch
          %645 = sbr.rel (%p643) target = $region56
        $region55: #{tpu_custom_call.1} parent=47 // pred_region
          %v646 = vld [vmem:[#allocation2] sm:$0xff]
          %v647 = vld [vmem:[#allocation2 + $0x8] sm:$0xff]
          %648 = vst.msk [vmem:[#allocation3] sm:$0xff] %vm367, %v646
          %649 = vst.msk [vmem:[#allocation3 + $0x8] sm:$0xff] %vm367, %v647
        $region56: #{tpu_custom_call.1} parent=47 // pred_fallthru
          _
        // Predicated region
        $region57: #{tpu_custom_call.1} parent=47 // pred_check
          %p650 = pneg %p221
        $region58: #{tpu_custom_call.1} parent=47 // pred_check_branch
          %652 = sbr.rel (%p650) target = $region60
        $region59: #{tpu_custom_call.1} parent=47 // pred_region
          %s653 = smul.u32 2, %s23
          %655 = vsyncadd [#allocation4], 0
          %s656 = smul.addr %s653, 8
          %s657 = scalar_lea.hbm %s7, %s656
          %s658 = sshll.u32 [#allocation3], 4
          %s659 = int_to_ptr.vmem [resolvable:$true] %s658
          %s660 = sshll.u32 %s657, 4
          %s661 = int_to_ptr.hbm [resolvable:$true] %s660
          %666 = dma.vmem_to_hbm [thread:$0]  %s659, 256, %s661, [#allocation4], 128, 128, 8
        $region60: #{tpu_custom_call.1} parent=47 // pred_fallthru
          _
        // Predicated region
        $region61: #{tpu_custom_call.1} parent=47 // pred_check
          %p667 = pneg %p221
        $region62: #{tpu_custom_call.1} parent=47 // pred_check_branch
          %669 = sbr.rel (%p667) target = $region64
        $region63: #{tpu_custom_call.1} parent=47 // pred_region
          %671 = dma.done [#allocation4], 256
        $region64: #{tpu_custom_call.1} parent=47 // pred_fallthru
          _
      $region48: #{tpu_custom_call.1} parent=5 // pred_fallthru
        _
      %p672 = scmp.le.s32.totalorder 2, %s14
      // Predicated region
      $region65: #{tpu_custom_call.1} parent=5 // pred_check
        %p673 = pneg %p672
      $region66: #{tpu_custom_call.1} parent=5 // pred_check_branch
        %675 = sbr.rel (%p673) target = $region68
      $region67: #{tpu_custom_call.1} parent=5 // pred_region
        %s676 = ssub.s32 %s14, 2
      $region68: #{tpu_custom_call.1} parent=5 // pred_fallthru
        _
    $region6: #{tpu_custom_call.1} parent=1 // loop_footer
      %s18 = sadd.s32 1, %s14
    $region7: #{tpu_custom_call.1} parent=1 // loop_footer_branch
      %13 = sbr.rel target = $region3
    $region8: #{tpu_custom_call.1} parent=1 // loop_exit
      _
    %677 = vsyncpa [#allocation4], 1
    %s678 = scalar_lea.sflag [#allocation4], 1
    %679 = vsyncpa %s678, 1

</llo_original>
